<compile_context>
chip_gen: v6e
topology: v6e:2x2x1
jax: 0.10.0
libtpu: 0.0.40
codegen_flags: <defaults>
</compile_context>

<pallas_src>
import functools

import jax
import jax.numpy as jnp
import numpy as np
from jax import lax
from jax.experimental import pallas as pl
from jax.experimental.pallas import tpu as pltpu

NEG_SLOPE = 0.1
BN_EPS = 1e-5
PAD_SUBLANE = 16  # sublane tile of the bf16 patch scratch


def _leaky(v):
    # identical to where(v>=0, v, 0.1*v) for 0 < slope < 1, one op cheaper
    return jnp.maximum(v, NEG_SLOPE * v)


def _tensorcores_per_chip():
    """Best-effort TC count: 1 on v5e/v6e (and v2/v3), 2 on megacore / v7x."""
    try:
        kind = jax.devices()[0].device_kind.lower()
    except Exception:
        return 1
    single_tc = ("v2", "v3", "v5 lite", "v5e", "v5litepod", "v6 lite", "v6e")
    return 1 if any(t in kind for t in single_tc) else 2


def _edge_masks(H, W, nb):
    """(9, nb*HW) {0,1} masks for the 3x3 taps, built from lane % HW so the
    same masks also zero cross-image leakage of the lane rolls."""
    HW = H * W
    hw = jnp.arange(nb * HW, dtype=jnp.int32) % HW
    yy = hw // W
    xx = hw % W
    rows = []
    for ky in range(3):
        for kx in range(3):
            dy, dx = ky - 1, kx - 1
            m = jnp.ones((nb * HW,), jnp.float32)
            if dy == -1:
                m = m * (yy >= 1)
            if dy == 1:
                m = m * (yy <= H - 2)
            if dx == -1:
                m = m * (xx >= 1)
            if dx == 1:
                m = m * (xx <= W - 2)
            rows.append(m)
    return jnp.stack(rows, axis=0)


# --------------------------------- kernel ------------------------------------
def _bottleneck_kernel(x_ref, m_ref, w1_ref, b1_ref, w2_ref, b2_ref,
                       w3_ref, b3_ref, o_ref, patch_ref, *, W, P):
    # x_ref    : (C, L)        input slab, channels on sublanes, L = nb*HW lanes
    # m_ref    : (9, L)        precomputed per-tap edge masks (f32 {0,1})
    # w1_ref   : (P, C)  bf16  conv1 1x1 (BN1 scale folded)
    # w2_ref   : (P, 9P) bf16  conv2 3x3, fused taps (BN2 scale folded)
    # w3_ref   : (C4, P) bf16  conv3 1x1 (BN3 scale folded)
    # b*_ref   : (Cout,1) f32  folded BN biases
    # o_ref    : (C4, L)
    # patch_ref: (9P, L) bf16  VMEM scratch for the fused 3x3 patch
    L = x_ref.shape[1]
    x = x_ref[...]                                               # (C, L) f32

    # ---- conv1 (1x1) + bn1 + leaky ------------------------------------------
    h = jnp.dot(w1_ref[...], x.astype(jnp.bfloat16),
                preferred_element_type=jnp.float32)
    h = _leaky(h + b1_ref[...])                                  # (P, L) f32

    # ---- conv2 (3x3, pad=1): 9 lane rolls + resident masks, one fused dot ---
    for t in range(9):
        dy, dx = t // 3 - 1, t % 3 - 1
        d = dy * W + dx
        tap = h if d == 0 else pltpu.roll(h, shift=(-d) % L, axis=1)
        if d != 0:
            tap = tap * m_ref[t:t + 1, :]                        # f32 mask mul
        patch_ref[t * P:(t + 1) * P, :] = tap.astype(jnp.bfloat16)

    g = jnp.dot(w2_ref[...], patch_ref[...],
                preferred_element_type=jnp.float32)
    g = _leaky(g + b2_ref[...])                                  # (P, L) f32

    # ---- conv3 (1x1) + bn3, residual add, leaky -----------------------------
    z = jnp.dot(w3_ref[...], g.astype(jnp.bfloat16),
                preferred_element_type=jnp.float32)
    o_ref[...] = _leaky(z + b3_ref[...] + x).astype(o_ref.dtype)  # C4 == C


# -------------------------------- wrapper -------------------------------------
def bottleneck_forward(x_nchw, kp, *, num_blocks=None):
    """x_nchw: (N, C, H, W) float32; returns (N, 4*planes, H, W)."""
    N, C, H, W = x_nchw.shape
    HW = H * W
    Pp = kp["w1"].shape[0]               # padded planes
    C4 = kp["w3"].shape[0]
    assert C4 == C, "downsample=None requires inplanes == planes * expansion"
    assert C % 8 == 0, "channel count must be a multiple of the sublane tile"

    if num_blocks is None:
        # One wide step on single-TC chips; 2 parallel blocks on 2-TC chips.
        num_blocks = 2 if (_tensorcores_per_chip() >= 2 and N % 2 == 0
                           and ((N // 2) * HW) % 128 == 0) else 1
    assert N % num_blocks == 0
    nb = N // num_blocks
    L = nb * HW
    assert num_blocks == 1 or L % 128 == 0

    # Channels-first slab: lane axis = (image, pixel), images contiguous.
    x2 = jnp.transpose(x_nchw.reshape(N, C, HW), (1, 0, 2)).reshape(C, N * HW)
    masks = _edge_masks(H, W, nb)                                # (9, L) f32

    kernel = functools.partial(_bottleneck_kernel, W=W, P=Pp)

    out = pl.pallas_call(
        kernel,
        out_shape=jax.ShapeDtypeStruct((C4, N * HW), x_nchw.dtype),
        grid_spec=pltpu.PrefetchScalarGridSpec(
            num_scalar_prefetch=0,
            grid=(num_blocks,),
            in_specs=[
                pl.BlockSpec((C, L), lambda i: (0, i)),          # x slab
                pl.BlockSpec((9, L), lambda i: (0, 0)),          # edge masks
                pl.BlockSpec((Pp, C), lambda i: (0, 0)),         # w1 (resident)
                pl.BlockSpec((Pp, 1), lambda i: (0, 0)),         # b1
                pl.BlockSpec((Pp, 9 * Pp), lambda i: (0, 0)),    # w2 fused
                pl.BlockSpec((Pp, 1), lambda i: (0, 0)),         # b2
                pl.BlockSpec((C4, Pp), lambda i: (0, 0)),        # w3
                pl.BlockSpec((C4, 1), lambda i: (0, 0)),         # b3
            ],
            out_specs=pl.BlockSpec((C4, L), lambda i: (0, i)),
            scratch_shapes=[pltpu.VMEM((9 * Pp, L), jnp.bfloat16)],
        ),
        compiler_params=pltpu.CompilerParams(
            dimension_semantics=("parallel",),
            vmem_limit_bytes=32 * 1024 * 1024,
        ),
    )(x2, masks, kp["w1"], kp["b1"], kp["w2"], kp["b2"], kp["w3"], kp["b3"])

    out = out.reshape(C4, N, HW)
    return jnp.transpose(out, (1, 0, 2)).reshape(N, C4, H, W)


# --------------------------- parameter construction ---------------------------
def make_params(key, inplanes, planes):
    """Raw (PyTorch-style) parameters: conv weights + BN (gamma/beta/mean/var)."""
    expansion = 4
    c4 = planes * expansion
    keys = jax.random.split(key, 15)
    p = {}
    p["w1"] = 0.1 * jax.random.normal(keys[0], (planes, inplanes), jnp.float32)      # (out, in)
    p["w2"] = 0.1 * jax.random.normal(keys[1], (3, 3, planes, planes), jnp.float32)  # HWIO
    p["w3"] = 0.1 * jax.random.normal(keys[2], (c4, planes), jnp.float32)            # (out, in)
    for i, (suf, c) in enumerate((("1", planes), ("2", planes), ("3", c4))):
        k = keys[3 + 4 * i: 7 + 4 * i]
        p["g" + suf] = 1.0 + 0.1 * jax.random.normal(k[0], (c,), jnp.float32)
        p["b" + suf] = 0.1 * jax.random.normal(k[1], (c,), jnp.float32)
        p["m" + suf] = 0.1 * jax.random.normal(k[2], (c,), jnp.float32)
        p["v" + suf] = jnp.abs(jax.random.normal(k[3], (c,), jnp.float32)) + 0.5
    return p


def fold_params(p, pad_to=PAD_SUBLANE):
    """Fold BN scales into the conv weights, pad planes to the sublane tile of
    the bf16 patch, and store weights in bf16 (biases stay f32)."""
    def scale_bias(g, b, m, v):
        s = g * lax.rsqrt(v + BN_EPS)
        return s, b - m * s

    s1, bb1 = scale_bias(p["g1"], p["b1"], p["m1"], p["v1"])
    s2, bb2 = scale_bias(p["g2"], p["b2"], p["m2"], p["v2"])
    s3, bb3 = scale_bias(p["g3"], p["b3"], p["m3"], p["v3"])

    P = p["w1"].shape[0]
    Pp = ((P + pad_to - 1) // pad_to) * pad_to
    padP = Pp - P

    w1f = jnp.pad(s1[:, None] * p["w1"], ((0, padP), (0, 0)))                 # (Pp, C)
    b1f = jnp.pad(bb1, (0, padP))[:, None]

    # (ky,kx,in,out) -> (out, ky, kx, in), pad out/in to Pp, fuse taps.
    w2t = s2[:, None, None, None] * jnp.transpose(p["w2"], (3, 0, 1, 2))      # (P,3,3,P)
    w2t = jnp.pad(w2t, ((0, padP), (0, 0), (0, 0), (0, padP)))                # (Pp,3,3,Pp)
    w2f = w2t.reshape(Pp, 9 * Pp)        # column index = (ky*3+kx)*Pp + in_ch
    b2f = jnp.pad(bb2, (0, padP))[:, None]

    w3f = jnp.pad(s3[:, None] * p["w3"], ((0, 0), (0, padP)))                 # (C4, Pp)
    b3f = bb3[:, None]

    return dict(w1=w1f.astype(jnp.bfloat16), b1=b1f,
                w2=w2f.astype(jnp.bfloat16), b2=b2f,
                w3=w3f.astype(jnp.bfloat16), b3=b3f)


# ----------------------------- pure-JAX reference -----------------------------
def bottleneck_ref(x_nchw, p):
    x = jnp.transpose(x_nchw, (0, 2, 3, 1))  # NHWC

    def bn(y, g, b, m, v):
        return (y - m) * (g * lax.rsqrt(v + BN_EPS)) + b

    h = jnp.einsum("nhwc,pc->nhwp", x, p["w1"])
    h = _leaky(bn(h, p["g1"], p["b1"], p["m1"], p["v1"]))
    g = lax.conv_general_dilated(h, p["w2"], (1, 1), "SAME",
                                 dimension_numbers=("NHWC", "HWIO", "NHWC"))
    g = _leaky(bn(g, p["g2"], p["b2"], p["m2"], p["v2"]))
    z = jnp.einsum("nhwp,qp->nhwq", g, p["w3"])
    z = bn(z, p["g3"], p["b3"], p["m3"], p["v3"])
    z = _leaky(z + x)
    return jnp.transpose(z, (0, 3, 1, 2))


if __name__ == "__main__":
    # Bottleneck(inplanes=16, planes=4, stride=1, downsample=None):
    # residual path requires inplanes == planes * expansion (= 16).
    N, INPLANES, PLANES, H, W = 2, 16, 4, 16, 16

    root = jax.random.PRNGKey(0)
    kx_, kp_ = jax.random.split(root)
    x = jax.random.normal(kx_, (N, INPLANES, H, W), jnp.float32)
    raw = make_params(kp_, INPLANES, PLANES)
    kparams = fold_params(raw)

    out = jax.block_until_ready(bottleneck_forward(x, kparams))
    ref = jax.block_until_ready(bottleneck_ref(x, raw))

    # bf16 MXU operands + BN folding reorder float ops vs. the f32 reference.
    np.testing.assert_allclose(np.asarray(out), np.asarray(ref),
                               rtol=1e-2, atol=1e-2)
    assert out.shape == (N, PLANES * 4, H, W)
    print("KERNEL_OK")
</pallas_src>

<mosaic_0001>
module attributes {stable_mosaic.version = 11 : i64} {
  func.func @_bottleneck_kernel(%arg0: i32, %arg1: memref<16x256xf32, #tpu.memory_space<vmem>>, %arg2: memref<9x256xf32, #tpu.memory_space<vmem>>, %arg3: memref<16x16xbf16, #tpu.memory_space<vmem>>, %arg4: memref<16x1xf32, #tpu.memory_space<vmem>>, %arg5: memref<16x144xbf16, #tpu.memory_space<vmem>>, %arg6: memref<16x1xf32, #tpu.memory_space<vmem>>, %arg7: memref<16x16xbf16, #tpu.memory_space<vmem>>, %arg8: memref<16x1xf32, #tpu.memory_space<vmem>>, %arg9: memref<16x256xf32, #tpu.memory_space<vmem>>, %arg10: memref<144x256xbf16, #tpu.memory_space<vmem>>) attributes {dimension_semantics = [#tpu.dimension_semantics<parallel>], iteration_bounds = array<i64: 2>, scalar_prefetch = 0 : i64, scratch_operands = 1 : i64, tpu.core_type = #tpu.core_type<tc>, window_params = [{transform_indices = @transform_0, window_bounds = array<i64: 16, 256>}, {pipeline_mode = #tpu.pipeline_mode<synchronous>, transform_indices = @transform_1, window_bounds = array<i64: 9, 256>}, {pipeline_mode = #tpu.pipeline_mode<synchronous>, transform_indices = @transform_2, window_bounds = array<i64: 16, 16>}, {pipeline_mode = #tpu.pipeline_mode<synchronous>, transform_indices = @transform_3, window_bounds = array<i64: 16, 1>}, {pipeline_mode = #tpu.pipeline_mode<synchronous>, transform_indices = @transform_4, window_bounds = array<i64: 16, 144>}, {pipeline_mode = #tpu.pipeline_mode<synchronous>, transform_indices = @transform_5, window_bounds = array<i64: 16, 1>}, {pipeline_mode = #tpu.pipeline_mode<synchronous>, transform_indices = @transform_6, window_bounds = array<i64: 16, 16>}, {pipeline_mode = #tpu.pipeline_mode<synchronous>, transform_indices = @transform_7, window_bounds = array<i64: 16, 1>}, {transform_indices = @transform_8, window_bounds = array<i64: 16, 256>}]} {
    %c0 = arith.constant 0 : index
    %c0_0 = arith.constant 0 : index
    %0 = vector.load %arg1[%c0, %c0_0] : memref<16x256xf32, #tpu.memory_space<vmem>>, vector<16x256xf32>
    %c0_1 = arith.constant 0 : index
    %c0_2 = arith.constant 0 : index
    %1 = vector.load %arg3[%c0_1, %c0_2] : memref<16x16xbf16, #tpu.memory_space<vmem>>, vector<16x16xbf16>
    %2 = arith.truncf %0 : vector<16x256xf32> to vector<16x256xbf16>
    %cst = arith.constant dense<0.000000e+00> : vector<16x256xf32>
    %3 = tpu.matmul %1, %2, %cst {dimension_numbers = #tpu.dot_dimension_numbers<[1], [0], [0], [1], [0, 0, 1, 1], [], []>} : vector<16x16xbf16>, vector<16x256xbf16>, vector<16x256xf32> -> vector<16x256xf32>
    %c0_3 = arith.constant 0 : index
    %c0_4 = arith.constant 0 : index
    %4 = vector.load %arg4[%c0_3, %c0_4] : memref<16x1xf32, #tpu.memory_space<vmem>>, vector<16x1xf32>
    %5 = vector.broadcast %4 : vector<16x1xf32> to vector<16x256xf32>
    %6 = arith.addf %3, %5 : vector<16x256xf32>
    %cst_5 = arith.constant 1.000000e-01 : f32
    %7 = vector.broadcast %cst_5 : f32 to vector<16x256xf32>
    %8 = arith.mulf %7, %6 : vector<16x256xf32>
    %9 = arith.maximumf %6, %8 : vector<16x256xf32>
    %c17_i32 = arith.constant 17 : i32
    %10 = tpu.dynamic_rotate %9 by %c17_i32 dim 1 : vector<16x256xf32>, i32 -> vector<16x256xf32>
    %c0_6 = arith.constant 0 : index
    %c0_7 = arith.constant 0 : index
    %11 = vector.load %arg2[%c0_6, %c0_7] : memref<9x256xf32, #tpu.memory_space<vmem>>, vector<1x256xf32>
    %12 = vector.broadcast %11 : vector<1x256xf32> to vector<16x256xf32>
    %13 = arith.mulf %10, %12 : vector<16x256xf32>
    %14 = arith.truncf %13 : vector<16x256xf32> to vector<16x256xbf16>
    %c0_8 = arith.constant 0 : index
    %c0_9 = arith.constant 0 : index
    %15 = vector.load %arg10[%c0_8, %c0_9] : memref<144x256xbf16, #tpu.memory_space<vmem>>, vector<16x256xbf16>
    tpu.vector_store %arg10[%c0_8, %c0_9], %14 {strides = array<i32>} : memref<144x256xbf16, #tpu.memory_space<vmem>>, vector<16x256xbf16>,
    %c16_i32 = arith.constant 16 : i32
    %16 = tpu.dynamic_rotate %9 by %c16_i32 dim 1 : vector<16x256xf32>, i32 -> vector<16x256xf32>
    %c1 = arith.constant 1 : index
    %c0_10 = arith.constant 0 : index
    %17 = vector.load %arg2[%c1, %c0_10] : memref<9x256xf32, #tpu.memory_space<vmem>>, vector<1x256xf32>
    %18 = vector.broadcast %17 : vector<1x256xf32> to vector<16x256xf32>
    %19 = arith.mulf %16, %18 : vector<16x256xf32>
    %20 = arith.truncf %19 : vector<16x256xf32> to vector<16x256xbf16>
    %c16 = arith.constant 16 : index
    %c0_11 = arith.constant 0 : index
    %21 = vector.load %arg10[%c16, %c0_11] : memref<144x256xbf16, #tpu.memory_space<vmem>>, vector<16x256xbf16>
    tpu.vector_store %arg10[%c16, %c0_11], %20 {strides = array<i32>} : memref<144x256xbf16, #tpu.memory_space<vmem>>, vector<16x256xbf16>,
    %c15_i32 = arith.constant 15 : i32
    %22 = tpu.dynamic_rotate %9 by %c15_i32 dim 1 : vector<16x256xf32>, i32 -> vector<16x256xf32>
    %c2 = arith.constant 2 : index
    %c0_12 = arith.constant 0 : index
    %23 = vector.load %arg2[%c2, %c0_12] : memref<9x256xf32, #tpu.memory_space<vmem>>, vector<1x256xf32>
    %24 = vector.broadcast %23 : vector<1x256xf32> to vector<16x256xf32>
    %25 = arith.mulf %22, %24 : vector<16x256xf32>
    %26 = arith.truncf %25 : vector<16x256xf32> to vector<16x256xbf16>
    %c32 = arith.constant 32 : index
    %c0_13 = arith.constant 0 : index
    %27 = vector.load %arg10[%c32, %c0_13] : memref<144x256xbf16, #tpu.memory_space<vmem>>, vector<16x256xbf16>
    tpu.vector_store %arg10[%c32, %c0_13], %26 {strides = array<i32>} : memref<144x256xbf16, #tpu.memory_space<vmem>>, vector<16x256xbf16>,
    %c1_i32 = arith.constant 1 : i32
    %28 = tpu.dynamic_rotate %9 by %c1_i32 dim 1 : vector<16x256xf32>, i32 -> vector<16x256xf32>
    %c3 = arith.constant 3 : index
    %c0_14 = arith.constant 0 : index
    %29 = vector.load %arg2[%c3, %c0_14] : memref<9x256xf32, #tpu.memory_space<vmem>>, vector<1x256xf32>
    %30 = vector.broadcast %29 : vector<1x256xf32> to vector<16x256xf32>
    %31 = arith.mulf %28, %30 : vector<16x256xf32>
    %32 = arith.truncf %31 : vector<16x256xf32> to vector<16x256xbf16>
    %c48 = arith.constant 48 : index
    %c0_15 = arith.constant 0 : index
    %33 = vector.load %arg10[%c48, %c0_15] : memref<144x256xbf16, #tpu.memory_space<vmem>>, vector<16x256xbf16>
    tpu.vector_store %arg10[%c48, %c0_15], %32 {strides = array<i32>} : memref<144x256xbf16, #tpu.memory_space<vmem>>, vector<16x256xbf16>,
    %34 = arith.truncf %9 : vector<16x256xf32> to vector<16x256xbf16>
    %c64 = arith.constant 64 : index
    %c0_16 = arith.constant 0 : index
    %35 = vector.load %arg10[%c64, %c0_16] : memref<144x256xbf16, #tpu.memory_space<vmem>>, vector<16x256xbf16>
    tpu.vector_store %arg10[%c64, %c0_16], %34 {strides = array<i32>} : memref<144x256xbf16, #tpu.memory_space<vmem>>, vector<16x256xbf16>,
    %c255_i32 = arith.constant 255 : i32
    %36 = tpu.dynamic_rotate %9 by %c255_i32 dim 1 : vector<16x256xf32>, i32 -> vector<16x256xf32>
    %c5 = arith.constant 5 : index
    %c0_17 = arith.constant 0 : index
    %37 = vector.load %arg2[%c5, %c0_17] : memref<9x256xf32, #tpu.memory_space<vmem>>, vector<1x256xf32>
    %38 = vector.broadcast %37 : vector<1x256xf32> to vector<16x256xf32>
    %39 = arith.mulf %36, %38 : vector<16x256xf32>
    %40 = arith.truncf %39 : vector<16x256xf32> to vector<16x256xbf16>
    %c80 = arith.constant 80 : index
    %c0_18 = arith.constant 0 : index
    %41 = vector.load %arg10[%c80, %c0_18] : memref<144x256xbf16, #tpu.memory_space<vmem>>, vector<16x256xbf16>
    tpu.vector_store %arg10[%c80, %c0_18], %40 {strides = array<i32>} : memref<144x256xbf16, #tpu.memory_space<vmem>>, vector<16x256xbf16>,
    %c241_i32 = arith.constant 241 : i32
    %42 = tpu.dynamic_rotate %9 by %c241_i32 dim 1 : vector<16x256xf32>, i32 -> vector<16x256xf32>
    %c6 = arith.constant 6 : index
    %c0_19 = arith.constant 0 : index
    %43 = vector.load %arg2[%c6, %c0_19] : memref<9x256xf32, #tpu.memory_space<vmem>>, vector<1x256xf32>
    %44 = vector.broadcast %43 : vector<1x256xf32> to vector<16x256xf32>
    %45 = arith.mulf %42, %44 : vector<16x256xf32>
    %46 = arith.truncf %45 : vector<16x256xf32> to vector<16x256xbf16>
    %c96 = arith.constant 96 : index
    %c0_20 = arith.constant 0 : index
    %47 = vector.load %arg10[%c96, %c0_20] : memref<144x256xbf16, #tpu.memory_space<vmem>>, vector<16x256xbf16>
    tpu.vector_store %arg10[%c96, %c0_20], %46 {strides = array<i32>} : memref<144x256xbf16, #tpu.memory_space<vmem>>, vector<16x256xbf16>,
    %c240_i32 = arith.constant 240 : i32
    %48 = tpu.dynamic_rotate %9 by %c240_i32 dim 1 : vector<16x256xf32>, i32 -> vector<16x256xf32>
    %c7 = arith.constant 7 : index
    %c0_21 = arith.constant 0 : index
    %49 = vector.load %arg2[%c7, %c0_21] : memref<9x256xf32, #tpu.memory_space<vmem>>, vector<1x256xf32>
    %50 = vector.broadcast %49 : vector<1x256xf32> to vector<16x256xf32>
    %51 = arith.mulf %48, %50 : vector<16x256xf32>
    %52 = arith.truncf %51 : vector<16x256xf32> to vector<16x256xbf16>
    %c112 = arith.constant 112 : index
    %c0_22 = arith.constant 0 : index
    %53 = vector.load %arg10[%c112, %c0_22] : memref<144x256xbf16, #tpu.memory_space<vmem>>, vector<16x256xbf16>
    tpu.vector_store %arg10[%c112, %c0_22], %52 {strides = array<i32>} : memref<144x256xbf16, #tpu.memory_space<vmem>>, vector<16x256xbf16>,
    %c239_i32 = arith.constant 239 : i32
    %54 = tpu.dynamic_rotate %9 by %c239_i32 dim 1 : vector<16x256xf32>, i32 -> vector<16x256xf32>
    %c8 = arith.constant 8 : index
    %c0_23 = arith.constant 0 : index
    %55 = vector.load %arg2[%c8, %c0_23] : memref<9x256xf32, #tpu.memory_space<vmem>>, vector<1x256xf32>
    %56 = vector.broadcast %55 : vector<1x256xf32> to vector<16x256xf32>
    %57 = arith.mulf %54, %56 : vector<16x256xf32>
    %58 = arith.truncf %57 : vector<16x256xf32> to vector<16x256xbf16>
    %c128 = arith.constant 128 : index
    %c0_24 = arith.constant 0 : index
    %59 = vector.load %arg10[%c128, %c0_24] : memref<144x256xbf16, #tpu.memory_space<vmem>>, vector<16x256xbf16>
    tpu.vector_store %arg10[%c128, %c0_24], %58 {strides = array<i32>} : memref<144x256xbf16, #tpu.memory_space<vmem>>, vector<16x256xbf16>,
    %c0_25 = arith.constant 0 : index
    %c0_26 = arith.constant 0 : index
    %60 = vector.load %arg5[%c0_25, %c0_26] : memref<16x144xbf16, #tpu.memory_space<vmem>>, vector<16x144xbf16>
    %c0_27 = arith.constant 0 : index
    %c0_28 = arith.constant 0 : index
    %61 = vector.load %arg10[%c0_27, %c0_28] : memref<144x256xbf16, #tpu.memory_space<vmem>>, vector<144x256xbf16>
    %cst_29 = arith.constant dense<0.000000e+00> : vector<16x256xf32>
    %62 = tpu.matmul %60, %61, %cst_29 {dimension_numbers = #tpu.dot_dimension_numbers<[1], [0], [0], [1], [0, 0, 1, 1], [], []>} : vector<16x144xbf16>, vector<144x256xbf16>, vector<16x256xf32> -> vector<16x256xf32>
    %c0_30 = arith.constant 0 : index
    %c0_31 = arith.constant 0 : index
    %63 = vector.load %arg6[%c0_30, %c0_31] : memref<16x1xf32, #tpu.memory_space<vmem>>, vector<16x1xf32>
    %64 = vector.broadcast %63 : vector<16x1xf32> to vector<16x256xf32>
    %65 = arith.addf %62, %64 : vector<16x256xf32>
    %cst_32 = arith.constant 1.000000e-01 : f32
    %66 = vector.broadcast %cst_32 : f32 to vector<16x256xf32>
    %67 = arith.mulf %66, %65 : vector<16x256xf32>
    %68 = arith.maximumf %65, %67 : vector<16x256xf32>
    %c0_33 = arith.constant 0 : index
    %c0_34 = arith.constant 0 : index
    %69 = vector.load %arg7[%c0_33, %c0_34] : memref<16x16xbf16, #tpu.memory_space<vmem>>, vector<16x16xbf16>
    %70 = arith.truncf %68 : vector<16x256xf32> to vector<16x256xbf16>
    %cst_35 = arith.constant dense<0.000000e+00> : vector<16x256xf32>
    %71 = tpu.matmul %69, %70, %cst_35 {dimension_numbers = #tpu.dot_dimension_numbers<[1], [0], [0], [1], [0, 0, 1, 1], [], []>} : vector<16x16xbf16>, vector<16x256xbf16>, vector<16x256xf32> -> vector<16x256xf32>
    %c0_36 = arith.constant 0 : index
    %c0_37 = arith.constant 0 : index
    %72 = vector.load %arg8[%c0_36, %c0_37] : memref<16x1xf32, #tpu.memory_space<vmem>>, vector<16x1xf32>
    %73 = vector.broadcast %72 : vector<16x1xf32> to vector<16x256xf32>
    %74 = arith.addf %71, %73 : vector<16x256xf32>
    %75 = arith.addf %74, %0 : vector<16x256xf32>
    %cst_38 = arith.constant 1.000000e-01 : f32
    %76 = vector.broadcast %cst_38 : f32 to vector<16x256xf32>
    %77 = arith.mulf %76, %75 : vector<16x256xf32>
    %78 = arith.maximumf %75, %77 : vector<16x256xf32>
    %c0_39 = arith.constant 0 : index
    %c0_40 = arith.constant 0 : index
    %79 = vector.load %arg9[%c0_39, %c0_40] : memref<16x256xf32, #tpu.memory_space<vmem>>, vector<16x256xf32>
    tpu.vector_store %arg9[%c0_39, %c0_40], %78 {strides = array<i32>} : memref<16x256xf32, #tpu.memory_space<vmem>>, vector<16x256xf32>,
    return
  }
  func.func @transform_0(%arg0: i32) -> (i32, i32) {
    %c0_i32 = arith.constant 0 : i32
    %c0_i32_0 = arith.constant 0 : i32
    return %c0_i32, %arg0 : i32, i32
  }
  func.func @transform_1(%arg0: i32) -> (i32, i32) {
    %c0_i32 = arith.constant 0 : i32
    %c0_i32_0 = arith.constant 0 : i32
    %c0_i32_1 = arith.constant 0 : i32
    return %c0_i32, %c0_i32_0 : i32, i32
  }
  func.func @transform_2(%arg0: i32) -> (i32, i32) {
    %c0_i32 = arith.constant 0 : i32
    %c0_i32_0 = arith.constant 0 : i32
    %c0_i32_1 = arith.constant 0 : i32
    return %c0_i32, %c0_i32_0 : i32, i32
  }
  func.func @transform_3(%arg0: i32) -> (i32, i32) {
    %c0_i32 = arith.constant 0 : i32
    %c0_i32_0 = arith.constant 0 : i32
    %c0_i32_1 = arith.constant 0 : i32
    return %c0_i32, %c0_i32_0 : i32, i32
  }
  func.func @transform_4(%arg0: i32) -> (i32, i32) {
    %c0_i32 = arith.constant 0 : i32
    %c0_i32_0 = arith.constant 0 : i32
    %c0_i32_1 = arith.constant 0 : i32
    return %c0_i32, %c0_i32_0 : i32, i32
  }
  func.func @transform_5(%arg0: i32) -> (i32, i32) {
    %c0_i32 = arith.constant 0 : i32
    %c0_i32_0 = arith.constant 0 : i32
    %c0_i32_1 = arith.constant 0 : i32
    return %c0_i32, %c0_i32_0 : i32, i32
  }
  func.func @transform_6(%arg0: i32) -> (i32, i32) {
    %c0_i32 = arith.constant 0 : i32
    %c0_i32_0 = arith.constant 0 : i32
    %c0_i32_1 = arith.constant 0 : i32
    return %c0_i32, %c0_i32_0 : i32, i32
  }
  func.func @transform_7(%arg0: i32) -> (i32, i32) {
    %c0_i32 = arith.constant 0 : i32
    %c0_i32_0 = arith.constant 0 : i32
    %c0_i32_1 = arith.constant 0 : i32
    return %c0_i32, %c0_i32_0 : i32, i32
  }
  func.func @transform_8(%arg0: i32) -> (i32, i32) {
    %c0_i32 = arith.constant 0 : i32
    %c0_i32_0 = arith.constant 0 : i32
    return %c0_i32, %arg0 : i32, i32
  }
}

</mosaic_0001>

<llo_original>
// kernel: tpu_custom_call.1
$region0: #{tpu_custom_call.1}
  #allocation0 [shape = 'u32[]', space=smem, size = 0x4, offset = 0x4, fixed_abs, tag = 'smem constant byte address 0x4 - core index']
  #allocation1 [shape = 'u32[144,128]{1,0:T(1,128)}', space=vmem, size = 0x12000, scoped, tag = 'internal scratch']
  #allocation2 [shape = 'bf16[144,256]{1,0:T(8,128)(2,1)}', space=vmem, size = 0x12000, scoped, tag = 'scratch operand']
  %s0 = inlined_call_operand.hbm [shape: f32[16,512], index: 0, kind: input, shape index: {}]
  %s1 = inlined_call_operand.vmem [shape: f32[9,256], index: 1, kind: input, shape index: {}]
  %s2 = inlined_call_operand.hbm [shape: bf16[16,16], index: 2, kind: input, shape index: {}]
  %s3 = inlined_call_operand.vmem [shape: f32[16,1], index: 3, kind: input, shape index: {}]
  %s4 = inlined_call_operand.vmem [shape: bf16[16,144], index: 4, kind: input, shape index: {}]
  %s5 = inlined_call_operand.vmem [shape: f32[16,1], index: 5, kind: input, shape index: {}]
  %s6 = inlined_call_operand.vmem [shape: bf16[16,16], index: 6, kind: input, shape index: {}]
  %s7 = inlined_call_operand.vmem [shape: f32[16,1], index: 7, kind: input, shape index: {}]
  %s8 = inlined_call_operand.hbm [shape: f32[16,512], index: 8, kind: output, shape index: {}]
  %s9 = sld [smem:[#allocation0]]
  $region73: #{tpu_custom_call.1} parent=0
    _
  %s11 = ssub.s32 1, %s9
  %s12 = scalar_select 0, %s11, %s9
  $region1: #{tpu_custom_call.1} parent=0
    #allocation3 [shape = 'u8[32768]{0}', space=vmem, size = 0x8000, scoped, tag = 'input window, operand 0']
    #allocation4 [shape = 's32[2]{0}', space=sflag, size = 0x8, scoped, tag = 'scoped memory for tpu_custom_call.1']
    #allocation5 [shape = 's32[2]{0}', space=sflag, size = 0x8, scoped, tag = 'scoped memory for tpu_custom_call.1']
    #allocation6 [shape = 'u8[4096]{0}', space=vmem, size = 0x1000, scoped, tag = 'input window, operand 2, single buffered']
    #allocation7 [shape = 's32[1]{0}', space=sflag, size = 0x4, scoped, tag = 'scoped memory for tpu_custom_call.1']
    #allocation8 [shape = 'u8[32768]{0}', space=vmem, size = 0x8000, scoped, tag = 'output window, operand 0']
    %13 = vsyncpa [#allocation4], 0
    %s14 = scalar_lea.sflag [#allocation4], 1
    %15 = vsyncpa %s14, 0
    %16 = vsyncpa [#allocation7], 0
    %17 = vsyncpa [#allocation5], 0
    %s18 = scalar_lea.sflag [#allocation5], 1
    %19 = vsyncpa %s18, 0
    loop: start=0, step=1, limit=4
    $region2: #{tpu_custom_call.1} parent=1 // loop_pre_header
      _
    $region3: #{tpu_custom_call.1} parent=1 // loop_header
      %s21 = sphi 0, %s25
      %p22 = scmp.ge.s32.totalorder %s21, 4
      %s31 = sphi 0, %s33
      %s34 = sphi 0, %s31
      %s35 = sphi 0, %s34
      %s51 = sphi 0, %s35
      %s55 = sphi 0, %s55
      %s57 = sphi 0, %s55
      %s58 = sphi 0, %s57
      %s72 = sphi 0, %s58
      %s76 = sphi 0, %s76
      %s78 = sphi 0, %s76
      %s79 = sphi 0, %s78
      %s93 = sphi 0, %s79
      %s97 = sphi 0, %s97
      %s99 = sphi 0, %s97
      %s100 = sphi 0, %s99
      %s114 = sphi 0, %s100
      %s118 = sphi 0, %s118
      %s120 = sphi 0, %s118
      %s121 = sphi 0, %s120
      %s135 = sphi 0, %s121
      %s139 = sphi 0, %s139
      %s141 = sphi 0, %s139
      %s142 = sphi 0, %s141
      %s156 = sphi 0, %s142
      %s160 = sphi 0, %s160
      %s162 = sphi 0, %s160
      %s163 = sphi 0, %s162
      %s177 = sphi 0, %s163
      %s181 = sphi 0, %s181
      %s183 = sphi 0, %s181
      %s184 = sphi 0, %s183
      %s198 = sphi 0, %s184
      %s204 = sphi 0, %s206
      %s207 = sphi 0, %s204
      %s208 = sphi 0, %s207
      %s224 = sphi 0, %s208
    $region4: #{tpu_custom_call.1} parent=1 // loop_header_branch
      %24 = sbr.rel (%p22) target = $region8
    $region5: #{tpu_custom_call.1} parent=1 // loop_body
      %s26 = ssub.s32 %s21, 1
      %s27 = ssub.s32 %s21, 2
      %s28 = sadd.s32 %s21, 1
      %s29 = ssub.s32 %s21, %s28
      %p30 = scmp.eq.s32.totalorder %s29, 0
      %s32 = sadd.s32 %s31, 1
      %s33 = scalar_select %p30, %s31, %s32
      %p36 = pneg %p30
      %p37 = scmp.eq.s32.totalorder %s21, 1
      %p38 = por %p36, %p37
      %p39 = scmp.ne.s32.totalorder %s31, %s34
      %p40 = scmp.eq.s32.totalorder %s21, 0
      %p41 = por %p39, %p40
      %p42 = scmp.ne.s32.totalorder %s31, %s34
      %p43 = scmp.eq.s32.totalorder %s26, 1
      %p44 = por %p42, %p43
      %p45 = scmp.ne.s32.totalorder %s34, %s35
      %p46 = scmp.eq.s32.totalorder %s26, 0
      %p47 = por %p45, %p46
      %p48 = scmp.ne.s32.totalorder %s34, %s35
      %p49 = scmp.eq.s32.totalorder %s27, 1
      %p50 = por %p48, %p49
      %p52 = scmp.ne.s32.totalorder %s35, %s51
      %p53 = scmp.eq.s32.totalorder %s27, 0
      %p54 = por %p52, %p53
      %s56 = sadd.s32 %s55, 1
      %p59 = scmp.eq.s32.totalorder %s21, 1
      %p60 = scmp.ne.s32.totalorder %s55, %s57
      %p61 = scmp.eq.s32.totalorder %s21, 0
      %p62 = por %p60, %p61
      %p63 = scmp.ne.s32.totalorder %s55, %s57
      %p64 = scmp.eq.s32.totalorder %s26, 1
      %p65 = por %p63, %p64
      %p66 = scmp.ne.s32.totalorder %s57, %s58
      %p67 = scmp.eq.s32.totalorder %s26, 0
      %p68 = por %p66, %p67
      %p69 = scmp.ne.s32.totalorder %s57, %s58
      %p70 = scmp.eq.s32.totalorder %s27, 1
      %p71 = por %p69, %p70
      %p73 = scmp.ne.s32.totalorder %s58, %s72
      %p74 = scmp.eq.s32.totalorder %s27, 0
      %p75 = por %p73, %p74
      %s77 = sadd.s32 %s76, 1
      %p80 = scmp.eq.s32.totalorder %s21, 1
      %p81 = scmp.ne.s32.totalorder %s76, %s78
      %p82 = scmp.eq.s32.totalorder %s21, 0
      %p83 = por %p81, %p82
      %p84 = scmp.ne.s32.totalorder %s76, %s78
      %p85 = scmp.eq.s32.totalorder %s26, 1
      %p86 = por %p84, %p85
      %p87 = scmp.ne.s32.totalorder %s78, %s79
      %p88 = scmp.eq.s32.totalorder %s26, 0
      %p89 = por %p87, %p88
      %p90 = scmp.ne.s32.totalorder %s78, %s79
      %p91 = scmp.eq.s32.totalorder %s27, 1
      %p92 = por %p90, %p91
      %p94 = scmp.ne.s32.totalorder %s79, %s93
      %p95 = scmp.eq.s32.totalorder %s27, 0
      %p96 = por %p94, %p95
      %s98 = sadd.s32 %s97, 1
      %p101 = scmp.eq.s32.totalorder %s21, 1
      %p102 = scmp.ne.s32.totalorder %s97, %s99
      %p103 = scmp.eq.s32.totalorder %s21, 0
      %p104 = por %p102, %p103
      %p105 = scmp.ne.s32.totalorder %s97, %s99
      %p106 = scmp.eq.s32.totalorder %s26, 1
      %p107 = por %p105, %p106
      %p108 = scmp.ne.s32.totalorder %s99, %s100
      %p109 = scmp.eq.s32.totalorder %s26, 0
      %p110 = por %p108, %p109
      %p111 = scmp.ne.s32.totalorder %s99, %s100
      %p112 = scmp.eq.s32.totalorder %s27, 1
      %p113 = por %p111, %p112
      %p115 = scmp.ne.s32.totalorder %s100, %s114
      %p116 = scmp.eq.s32.totalorder %s27, 0
      %p117 = por %p115, %p116
      %s119 = sadd.s32 %s118, 1
      %p122 = scmp.eq.s32.totalorder %s21, 1
      %p123 = scmp.ne.s32.totalorder %s118, %s120
      %p124 = scmp.eq.s32.totalorder %s21, 0
      %p125 = por %p123, %p124
      %p126 = scmp.ne.s32.totalorder %s118, %s120
      %p127 = scmp.eq.s32.totalorder %s26, 1
      %p128 = por %p126, %p127
      %p129 = scmp.ne.s32.totalorder %s120, %s121
      %p130 = scmp.eq.s32.totalorder %s26, 0
      %p131 = por %p129, %p130
      %p132 = scmp.ne.s32.totalorder %s120, %s121
      %p133 = scmp.eq.s32.totalorder %s27, 1
      %p134 = por %p132, %p133
      %p136 = scmp.ne.s32.totalorder %s121, %s135
      %p137 = scmp.eq.s32.totalorder %s27, 0
      %p138 = por %p136, %p137
      %s140 = sadd.s32 %s139, 1
      %p143 = scmp.eq.s32.totalorder %s21, 1
      %p144 = scmp.ne.s32.totalorder %s139, %s141
      %p145 = scmp.eq.s32.totalorder %s21, 0
      %p146 = por %p144, %p145
      %p147 = scmp.ne.s32.totalorder %s139, %s141
      %p148 = scmp.eq.s32.totalorder %s26, 1
      %p149 = por %p147, %p148
      %p150 = scmp.ne.s32.totalorder %s141, %s142
      %p151 = scmp.eq.s32.totalorder %s26, 0
      %p152 = por %p150, %p151
      %p153 = scmp.ne.s32.totalorder %s141, %s142
      %p154 = scmp.eq.s32.totalorder %s27, 1
      %p155 = por %p153, %p154
      %p157 = scmp.ne.s32.totalorder %s142, %s156
      %p158 = scmp.eq.s32.totalorder %s27, 0
      %p159 = por %p157, %p158
      %s161 = sadd.s32 %s160, 1
      %p164 = scmp.eq.s32.totalorder %s21, 1
      %p165 = scmp.ne.s32.totalorder %s160, %s162
      %p166 = scmp.eq.s32.totalorder %s21, 0
      %p167 = por %p165, %p166
      %p168 = scmp.ne.s32.totalorder %s160, %s162
      %p169 = scmp.eq.s32.totalorder %s26, 1
      %p170 = por %p168, %p169
      %p171 = scmp.ne.s32.totalorder %s162, %s163
      %p172 = scmp.eq.s32.totalorder %s26, 0
      %p173 = por %p171, %p172
      %p174 = scmp.ne.s32.totalorder %s162, %s163
      %p175 = scmp.eq.s32.totalorder %s27, 1
      %p176 = por %p174, %p175
      %p178 = scmp.ne.s32.totalorder %s163, %s177
      %p179 = scmp.eq.s32.totalorder %s27, 0
      %p180 = por %p178, %p179
      %s182 = sadd.s32 %s181, 1
      %p185 = scmp.eq.s32.totalorder %s21, 1
      %p186 = scmp.ne.s32.totalorder %s181, %s183
      %p187 = scmp.eq.s32.totalorder %s21, 0
      %p188 = por %p186, %p187
      %p189 = scmp.ne.s32.totalorder %s181, %s183
      %p190 = scmp.eq.s32.totalorder %s26, 1
      %p191 = por %p189, %p190
      %p192 = scmp.ne.s32.totalorder %s183, %s184
      %p193 = scmp.eq.s32.totalorder %s26, 0
      %p194 = por %p192, %p193
      %p195 = scmp.ne.s32.totalorder %s183, %s184
      %p196 = scmp.eq.s32.totalorder %s27, 1
      %p197 = por %p195, %p196
      %p199 = scmp.ne.s32.totalorder %s184, %s198
      %p200 = scmp.eq.s32.totalorder %s27, 0
      %p201 = por %p199, %p200
      %s202 = ssub.s32 %s21, %s28
      %p203 = scmp.eq.s32.totalorder %s202, 0
      %s205 = sadd.s32 %s204, 1
      %s206 = scalar_select %p203, %s204, %s205
      %p209 = pneg %p203
      %p210 = scmp.eq.s32.totalorder %s21, 1
      %p211 = por %p209, %p210
      %p212 = scmp.ne.s32.totalorder %s204, %s207
      %p213 = scmp.eq.s32.totalorder %s21, 0
      %p214 = por %p212, %p213
      %p215 = scmp.ne.s32.totalorder %s204, %s207
      %p216 = scmp.eq.s32.totalorder %s26, 1
      %p217 = por %p215, %p216
      %p218 = scmp.ne.s32.totalorder %s207, %s208
      %p219 = scmp.eq.s32.totalorder %s26, 0
      %p220 = por %p218, %p219
      %p221 = scmp.ne.s32.totalorder %s207, %s208
      %p222 = scmp.eq.s32.totalorder %s27, 1
      %p223 = por %p221, %p222
      %p225 = scmp.ne.s32.totalorder %s208, %s224
      %p226 = scmp.eq.s32.totalorder %s27, 0
      %p227 = por %p225, %p226
      %p228 = scmp.le.s32.totalorder 1, %s21
      %p229 = scmp.lt.s32.totalorder %s21, 3
      %p230 = pnand %p228, %p229
      %p231 = pneg %p230
      // Predicated region
      $region9: #{tpu_custom_call.1} parent=5 // pred_check
        _
      $region10: #{tpu_custom_call.1} parent=5 // pred_check_branch
        %233 = sbr.rel (%p230) target = $region12
      $region11: #{tpu_custom_call.1} parent=5 // pred_region
        %s234 = ssub.s32 %s21, 1
        // Predicated region
        $region13: #{tpu_custom_call.1} parent=11 // pred_check
          %p235 = pneg %p68
        $region14: #{tpu_custom_call.1} parent=11 // pred_check_branch
          %237 = sbr.rel (%p235) target = $region16
        $region15: #{tpu_custom_call.1} parent=11 // pred_region
          _
        $region16: #{tpu_custom_call.1} parent=11 // pred_fallthru
          _
        // Predicated region
        $region17: #{tpu_custom_call.1} parent=11 // pred_check
          %p238 = pneg %p89
        $region18: #{tpu_custom_call.1} parent=11 // pred_check_branch
          %240 = sbr.rel (%p238) target = $region20
        $region19: #{tpu_custom_call.1} parent=11 // pred_region
          %s242 = ssub.s32 128, 128
          %243 = vsyncadd [#allocation7], %s242
          %s244 = sshll.u32 [#allocation6], 4
          %s245 = int_to_ptr.vmem [resolvable:$true] %s244
          %250 = dma.hbm_to_vmem [thread:$0]  %s2, 128, %s245, [#allocation7], 64, 64, 4
        $region20: #{tpu_custom_call.1} parent=11 // pred_fallthru
          _
        // Predicated region
        $region21: #{tpu_custom_call.1} parent=11 // pred_check
          %p251 = pneg %p110
        $region22: #{tpu_custom_call.1} parent=11 // pred_check_branch
          %253 = sbr.rel (%p251) target = $region24
        $region23: #{tpu_custom_call.1} parent=11 // pred_region
          _
        $region24: #{tpu_custom_call.1} parent=11 // pred_fallthru
          _
        // Predicated region
        $region25: #{tpu_custom_call.1} parent=11 // pred_check
          %p254 = pneg %p131
        $region26: #{tpu_custom_call.1} parent=11 // pred_check_branch
          %256 = sbr.rel (%p254) target = $region28
        $region27: #{tpu_custom_call.1} parent=11 // pred_region
          _
        $region28: #{tpu_custom_call.1} parent=11 // pred_fallthru
          _
        // Predicated region
        $region29: #{tpu_custom_call.1} parent=11 // pred_check
          %p257 = pneg %p152
        $region30: #{tpu_custom_call.1} parent=11 // pred_check_branch
          %259 = sbr.rel (%p257) target = $region32
        $region31: #{tpu_custom_call.1} parent=11 // pred_region
          _
        $region32: #{tpu_custom_call.1} parent=11 // pred_fallthru
          _
        // Predicated region
        $region33: #{tpu_custom_call.1} parent=11 // pred_check
          %p260 = pneg %p173
        $region34: #{tpu_custom_call.1} parent=11 // pred_check_branch
          %262 = sbr.rel (%p260) target = $region36
        $region35: #{tpu_custom_call.1} parent=11 // pred_region
          _
        $region36: #{tpu_custom_call.1} parent=11 // pred_fallthru
          _
        // Predicated region
        $region37: #{tpu_custom_call.1} parent=11 // pred_check
          %p263 = pneg %p194
        $region38: #{tpu_custom_call.1} parent=11 // pred_check_branch
          %265 = sbr.rel (%p263) target = $region40
        $region39: #{tpu_custom_call.1} parent=11 // pred_region
          _
        $region40: #{tpu_custom_call.1} parent=11 // pred_fallthru
          _
      $region12: #{tpu_custom_call.1} parent=5 // pred_fallthru
        _
      %p266 = scmp.lt.s32.totalorder %s21, 2
      // Predicated region
      $region41: #{tpu_custom_call.1} parent=5 // pred_check
        %p267 = pneg %p266
      $region42: #{tpu_custom_call.1} parent=5 // pred_check_branch
        %269 = sbr.rel (%p267) target = $region44
      $region43: #{tpu_custom_call.1} parent=5 // pred_region
        // Predicated region
        $region45: #{tpu_custom_call.1} parent=43 // pred_check
          %p270 = pneg %p41
        $region46: #{tpu_custom_call.1} parent=43 // pred_check_branch
          %272 = sbr.rel (%p270) target = $region48
        $region47: #{tpu_custom_call.1} parent=43 // pred_region
          %s273 = sand.u32 %s31, 1
          %s274 = scalar_lea.sflag [#allocation4], %s273
          %s275 = sand.u32 %s31, 1
          %s276 = smul.addr %s275, 32
          %s277 = scalar_lea.vmem [#allocation3], %s276
          %s278 = smul.u32 2, %s21
          %s280 = ssub.s32 512, 512
          %281 = vsyncadd %s274, %s280
          %s282 = smul.addr %s278, 128
          %s283 = scalar_lea.hbm %s0, %s282
          %s284 = sshll.u32 %s277, 4
          %s285 = int_to_ptr.vmem [resolvable:$true] %s284
          %290 = dma.hbm_to_vmem [thread:$0]  %s283, 512, %s285, %s274, 512, 256, 16
        $region48: #{tpu_custom_call.1} parent=43 // pred_fallthru
          _
      $region44: #{tpu_custom_call.1} parent=5 // pred_fallthru
        _
      %p291 = scmp.le.s32.totalorder 1, %s21
      %p292 = scmp.lt.s32.totalorder %s21, 3
      %p293 = pnand %p291, %p292
      %p294 = pneg %p293
      // Predicated region
      $region49: #{tpu_custom_call.1} parent=5 // pred_check
        _
      $region50: #{tpu_custom_call.1} parent=5 // pred_check_branch
        %296 = sbr.rel (%p293) target = $region52
      $region51: #{tpu_custom_call.1} parent=5 // pred_region
        %s297 = ssub.s32 %s21, 1
        %s298 = sand.u32 %s34, 1
        %s299 = scalar_lea.sflag [#allocation4], %s298
        %s300 = sand.u32 %s34, 1
        %s301 = smul.addr %s300, 32
        %s302 = scalar_lea.vmem [#allocation3], %s301
        // Predicated region
        $region53: #{tpu_custom_call.1} parent=51 // pred_check
          %p303 = pneg %p47
        $region54: #{tpu_custom_call.1} parent=51 // pred_check_branch
          %305 = sbr.rel (%p303) target = $region56
        $region55: #{tpu_custom_call.1} parent=51 // pred_region
          %306 = dma.done %s299, 512
        $region56: #{tpu_custom_call.1} parent=51 // pred_fallthru
          _
        // Predicated region
        $region57: #{tpu_custom_call.1} parent=51 // pred_check
          %p307 = pneg %p89
        $region58: #{tpu_custom_call.1} parent=51 // pred_check_branch
          %309 = sbr.rel (%p307) target = $region60
        $region59: #{tpu_custom_call.1} parent=51 // pred_region
          %310 = dma.done [#allocation7], 128
        $region60: #{tpu_custom_call.1} parent=51 // pred_fallthru
          _
        %s311 = sand.u32 %s34, 1
        %s312 = scalar_lea.sflag [#allocation4], %s311
        %s313 = sand.u32 %s34, 1
        %s314 = smul.addr %s313, 32
        %s315 = scalar_lea.vmem [#allocation3], %s314
        %p316 = pneg %p47
        %p317 = pneg %p44
        %p318 = pneg %p68
        %p319 = pneg %p65
        %p320 = pneg %p89
        %p321 = pneg %p86
        %p322 = pneg %p110
        %p323 = pneg %p107
        %p324 = pneg %p131
        %p325 = pneg %p128
        %p326 = pneg %p152
        %p327 = pneg %p149
        %p328 = pneg %p173
        %p329 = pneg %p170
        %p330 = pneg %p194
        %p331 = pneg %p191
        %p332 = pneg %p220
        %p333 = pneg %p217
        %s334 = sand.u32 %s207, 1
        %s335 = scalar_lea.sflag [#allocation5], %s334
        %s336 = sand.u32 %s207, 1
        %s337 = smul.addr %s336, 32
        %s338 = scalar_lea.vmem [#allocation8], %s337
        %s339 = smul.u32 2, %s26
        %s340 = smul.u32 2, %s26
        %v342 = vld [vmem:[%s302] sm:$0xff]
        %v343 = vld [vmem:[%s302 + $0x8] sm:$0xff]
        %v344 = vld [vmem:[%s302 + $0x10] sm:$0xff]
        %v345 = vld [vmem:[%s302 + $0x18] sm:$0xff]
        %v346 = vld [vmem:[#allocation6] sm:$0xf]
        %v347 = vld [vmem:[#allocation6 + $0x4] sm:$0xf]
        %v348 = vpack.c.bf16 %v344, %v342
        %v349 = vpack.c.bf16 %v345, %v343
        %v350 = vld [vmem:[%s3] sm:$0xff]
        %v351 = vld [vmem:[%s3 + $0x8] sm:$0xff]
        %353 = vset.pattern.permute.xlu0 0
        %354 = vperm.xlu0 %353, %v350
        %v355 = vpop.permute.xlu0 %354
        %358 = vset.pattern.permute.xlu0 0
        %359 = vperm.xlu0 %358, %v351
        %v360 = vpop.permute.xlu0 %359
        %v364 = vunpack.c.l.b16 %v346
        %v365 = vunpack.c.l.b16 %v347
        %v366 = vpack.c.b16 %v365, %v364
        %vm367 = vcmask 130048
        %v369 = vsel %vm367, %v366, 0
        %371 = vmatprep.subr.bf16.mxu0 0
        %372 = vmatpush1.bf16.msra.mxu0 0
        %373 = vmatprep.subr.bf16.mxu0 0
        %374 = vmatpush1.bf16.msra.mxu0 0
        %375 = vmatprep.subr.bf16.mxu0 0
        %376 = vmatpush1.bf16.msra.mxu0 0
        %377 = vmatprep.subr.bf16.mxu0 0
        %378 = vmatpush1.bf16.msra.mxu0 0
        %379 = vmatprep.subr.bf16.mxu0 0
        %380 = vmatpush1.bf16.msra.mxu0 0
        %381 = vmatprep.subr.bf16.mxu0 0
        %382 = vmatpush1.bf16.msra.mxu0 0
        %383 = vmatprep.subr.bf16.mxu0 0
        %384 = vmatpush1.bf16.msra.mxu0 0
        %385 = vmatprep.subr.bf16.mxu0 %v349
        %386 = vmatpush1.bf16.msra.mxu0 %v348
        %387 = vmatprep.subr.bf16.mxu0 0
        %388 = vmatpush2.bf16.msra.mxu0 0
        %389 = vmatprep.subr.bf16.mxu0 0
        %390 = vmatpush2.bf16.msra.mxu0 0
        %391 = vmatprep.subr.bf16.mxu0 0
        %392 = vmatpush2.bf16.msra.mxu0 0
        %393 = vmatprep.subr.bf16.mxu0 0
        %394 = vmatpush2.bf16.msra.mxu0 0
        %395 = vmatprep.subr.bf16.mxu0 0
        %396 = vmatpush2.bf16.msra.mxu0 0
        %397 = vmatprep.subr.bf16.mxu0 0
        %398 = vmatpush2.bf16.msra.mxu0 0
        %399 = vmatprep.subr.bf16.mxu0 0
        %400 = vmatpush2.bf16.msra.mxu0 0
        %401 = vmatprep.subr.bf16.mxu0 0
        %402 = vmatpush2.bf16.msra.mxu0 0
        %403 = vmatprep.mubr.bf16.mxu0 0
        %404 = vmatmul.mubr.bf16.gmra.mxu0 %v369
        %v405 = vpop.f32.mrf.mxu0
        %v406 = vadd.f32 %v355, %v405
        %v407 = vpop.f32.mrf.mxu0
        %v408 = vadd.f32 %v355, %v407
        %v409 = vpop.f32.mrf.mxu0
        %v410 = vadd.f32 %v360, %v409
        %v411 = vpop.f32.mrf.mxu0
        %v412 = vadd.f32 %v360, %v411
        %413 = vdwg.mxu0
        %v414 = vmul.f32 %v406, 0.1
        %v415 = vmul.f32 %v408, 0.1
        %v416 = vmul.f32 %v410, 0.1
        %v417 = vmul.f32 %v412, 0.1
        %v418 = vmax.f32 %v406, %v414
        %v419 = vmax.f32 %v408, %v415
        %v420 = vmax.f32 %v410, %v416
        %v421 = vmax.f32 %v412, %v417
        %422 = vrot.lane.b32.xlu0 %v418, 17
        %v423 = vpop.permute.xlu0 %422
        %424 = vrot.lane.b32.xlu0 %v420, 17
        %v425 = vpop.permute.xlu0 %424
        %426 = vrot.lane.b32.xlu0 %v419, 17
        %v427 = vpop.permute.xlu0 %426
        %428 = vrot.lane.b32.xlu0 %v421, 17
        %v429 = vpop.permute.xlu0 %428
        %v430 = vlaneseq
        %v431 = vand.u32 %v430, 127
        %vm432 = vcmp.lt.s32.totalorder %v431, 17
        %v433 = vsel %vm432, %v423, %v427
        %v434 = vsel %vm432, %v425, %v429
        %v435 = vsel %vm432, %v427, %v423
        %v436 = vsel %vm432, %v429, %v425
        %v437 = vld [vmem:[%s1] ss:$8 sm:$0x3]
        %v439 = vlaneseq
        %v440 = vshrl.u32 %v439, 7
        %v441 = vsub.s32 0, %v440
        %v442 = vrot.slane %v437, %v441
        %v443 = vlaneseq
        %v444 = vshrl.u32 %v443, 7
        %v445 = vsub.s32 1, %v444
        %v446 = vrot.slane %v437, %v445
        %v449 = vmul.f32 %v435, %v442
        %v450 = vmul.f32 %v433, %v446
        %v451 = vmul.f32 %v436, %v442
        %v452 = vmul.f32 %v434, %v446
        %v453 = vpack.c.bf16 %v451, %v449
        %v454 = vpack.c.bf16 %v452, %v450
        %v457 = vunpack.c.l.b16 %v453
        %v458 = vunpack.c.l.b16 %v454
        %v459 = vunpack.c.h.b16 %v453
        %v460 = vunpack.c.h.b16 %v454
        %v461 = vpack.c.b16 %v458, %v457
        %v462 = vpack.c.b16 %v460, %v459
        %465 = vst [vmem:[#allocation2] sm:$0xff] %v461
        %466 = vst [vmem:[#allocation2 + $0x8] sm:$0xff] %v462
        %467 = vrot.lane.b32.xlu0 %v418, 16
        %v468 = vpop.permute.xlu0 %467
        %469 = vrot.lane.b32.xlu0 %v420, 16
        %v470 = vpop.permute.xlu0 %469
        %471 = vrot.lane.b32.xlu0 %v419, 16
        %v472 = vpop.permute.xlu0 %471
        %473 = vrot.lane.b32.xlu0 %v421, 16
        %v474 = vpop.permute.xlu0 %473
        %vm475 = vcmp.lt.s32.totalorder %v431, 16
        %v476 = vsel %vm475, %v468, %v472
        %v477 = vsel %vm475, %v470, %v474
        %v478 = vsel %vm475, %v472, %v468
        %v479 = vsel %vm475, %v474, %v470
        %s480 = scalar_lea.vmem %s1, 1
        %v481 = vld [vmem:[%s480] ss:$8 sm:$0x3]
        %v483 = vlaneseq
        %v484 = vshrl.u32 %v483, 7
        %v485 = vsub.s32 0, %v484
        %v486 = vrot.slane %v481, %v485
        %v487 = vlaneseq
        %v488 = vshrl.u32 %v487, 7
        %v489 = vsub.s32 1, %v488
        %v490 = vrot.slane %v481, %v489
        %v493 = vmul.f32 %v478, %v486
        %v494 = vmul.f32 %v476, %v490
        %v495 = vmul.f32 %v479, %v486
        %v496 = vmul.f32 %v477, %v490
        %v497 = vpack.c.bf16 %v495, %v493
        %v498 = vpack.c.bf16 %v496, %v494
        %v501 = vunpack.c.l.b16 %v497
        %v502 = vunpack.c.l.b16 %v498
        %v503 = vunpack.c.h.b16 %v497
        %v504 = vunpack.c.h.b16 %v498
        %v505 = vpack.c.b16 %v502, %v501
        %v506 = vpack.c.b16 %v504, %v503
        %509 = vst [vmem:[#allocation2 + $0x10] sm:$0xff] %v505
        %510 = vst [vmem:[#allocation2 + $0x18] sm:$0xff] %v506
        %511 = vrot.lane.b32.xlu0 %v418, 15
        %v512 = vpop.permute.xlu0 %511
        %513 = vrot.lane.b32.xlu0 %v420, 15
        %v514 = vpop.permute.xlu0 %513
        %515 = vrot.lane.b32.xlu0 %v419, 15
        %v516 = vpop.permute.xlu0 %515
        %517 = vrot.lane.b32.xlu0 %v421, 15
        %v518 = vpop.permute.xlu0 %517
        %vm519 = vcmp.lt.s32.totalorder %v431, 15
        %v520 = vsel %vm519, %v512, %v516
        %v521 = vsel %vm519, %v514, %v518
        %v522 = vsel %vm519, %v516, %v512
        %v523 = vsel %vm519, %v518, %v514
        %s524 = scalar_lea.vmem %s1, 2
        %v525 = vld [vmem:[%s524] ss:$8 sm:$0x3]
        %v527 = vlaneseq
        %v528 = vshrl.u32 %v527, 7
        %v529 = vsub.s32 0, %v528
        %v530 = vrot.slane %v525, %v529
        %v531 = vlaneseq
        %v532 = vshrl.u32 %v531, 7
        %v533 = vsub.s32 1, %v532
        %v534 = vrot.slane %v525, %v533
        %v537 = vmul.f32 %v522, %v530
        %v538 = vmul.f32 %v520, %v534
        %v539 = vmul.f32 %v523, %v530
        %v540 = vmul.f32 %v521, %v534
        %v541 = vpack.c.bf16 %v539, %v537
        %v542 = vpack.c.bf16 %v540, %v538
        %v545 = vunpack.c.l.b16 %v541
        %v546 = vunpack.c.l.b16 %v542
        %v547 = vunpack.c.h.b16 %v541
        %v548 = vunpack.c.h.b16 %v542
        %v549 = vpack.c.b16 %v546, %v545
        %v550 = vpack.c.b16 %v548, %v547
        %553 = vst [vmem:[#allocation2 + $0x20] sm:$0xff] %v549
        %554 = vst [vmem:[#allocation2 + $0x28] sm:$0xff] %v550
        %555 = vrot.lane.b32.xlu0 %v418, 1
        %v556 = vpop.permute.xlu0 %555
        %557 = vrot.lane.b32.xlu0 %v420, 1
        %v558 = vpop.permute.xlu0 %557
        %559 = vrot.lane.b32.xlu0 %v419, 1
        %v560 = vpop.permute.xlu0 %559
        %561 = vrot.lane.b32.xlu0 %v421, 1
        %v562 = vpop.permute.xlu0 %561
        %vm563 = vcmp.lt.s32.totalorder %v431, 1
        %v564 = vsel %vm563, %v556, %v560
        %v565 = vsel %vm563, %v558, %v562
        %v566 = vsel %vm563, %v560, %v556
        %v567 = vsel %vm563, %v562, %v558
        %s568 = scalar_lea.vmem %s1, 3
        %v569 = vld [vmem:[%s568] ss:$8 sm:$0x3]
        %v571 = vlaneseq
        %v572 = vshrl.u32 %v571, 7
        %v573 = vsub.s32 0, %v572
        %v574 = vrot.slane %v569, %v573
        %v575 = vlaneseq
        %v576 = vshrl.u32 %v575, 7
        %v577 = vsub.s32 1, %v576
        %v578 = vrot.slane %v569, %v577
        %v581 = vmul.f32 %v566, %v574
        %v582 = vmul.f32 %v564, %v578
        %v583 = vmul.f32 %v567, %v574
        %v584 = vmul.f32 %v565, %v578
        %v585 = vpack.c.bf16 %v583, %v581
        %v586 = vpack.c.bf16 %v584, %v582
        %v589 = vunpack.c.l.b16 %v585
        %v590 = vunpack.c.l.b16 %v586
        %v591 = vunpack.c.h.b16 %v585
        %v592 = vunpack.c.h.b16 %v586
        %v593 = vpack.c.b16 %v590, %v589
        %v594 = vpack.c.b16 %v592, %v591
        %597 = vst [vmem:[#allocation2 + $0x30] sm:$0xff] %v593
        %598 = vst [vmem:[#allocation2 + $0x38] sm:$0xff] %v594
        %v599 = vpack.c.bf16 %v420, %v418
        %v600 = vpack.c.bf16 %v421, %v419
        %v603 = vunpack.c.l.b16 %v599
        %v604 = vunpack.c.l.b16 %v600
        %v605 = vunpack.c.h.b16 %v599
        %v606 = vunpack.c.h.b16 %v600
        %v607 = vpack.c.b16 %v604, %v603
        %v608 = vpack.c.b16 %v606, %v605
        %611 = vst [vmem:[#allocation2 + $0x40] sm:$0xff] %v607
        %612 = vst [vmem:[#allocation2 + $0x48] sm:$0xff] %v608
        %613 = vrot.lane.b32.xlu0 %v418, 127
        %v614 = vpop.permute.xlu0 %613
        %615 = vrot.lane.b32.xlu0 %v420, 127
        %v616 = vpop.permute.xlu0 %615
        %617 = vrot.lane.b32.xlu0 %v419, 127
        %v618 = vpop.permute.xlu0 %617
        %619 = vrot.lane.b32.xlu0 %v421, 127
        %v620 = vpop.permute.xlu0 %619
        %vm621 = vcmp.lt.s32.totalorder %v431, 127
        %v622 = vsel %vm621, %v614, %v618
        %v623 = vsel %vm621, %v616, %v620
        %v624 = vsel %vm621, %v618, %v614
        %v625 = vsel %vm621, %v620, %v616
        %s626 = scalar_lea.vmem %s1, 5
        %v627 = vld [vmem:[%s626] ss:$8 sm:$0x3]
        %v629 = vlaneseq
        %v630 = vshrl.u32 %v629, 7
        %v631 = vsub.s32 0, %v630
        %v632 = vrot.slane %v627, %v631
        %v633 = vlaneseq
        %v634 = vshrl.u32 %v633, 7
        %v635 = vsub.s32 1, %v634
        %v636 = vrot.slane %v627, %v635
        %v639 = vmul.f32 %v622, %v632
        %v640 = vmul.f32 %v624, %v636
        %v641 = vmul.f32 %v623, %v632
        %v642 = vmul.f32 %v625, %v636
        %v643 = vpack.c.bf16 %v641, %v639
        %v644 = vpack.c.bf16 %v642, %v640
        %v647 = vunpack.c.l.b16 %v643
        %v648 = vunpack.c.l.b16 %v644
        %v649 = vunpack.c.h.b16 %v643
        %v650 = vunpack.c.h.b16 %v644
        %v651 = vpack.c.b16 %v648, %v647
        %v652 = vpack.c.b16 %v650, %v649
        %655 = vst [vmem:[#allocation2 + $0x50] sm:$0xff] %v651
        %656 = vst [vmem:[#allocation2 + $0x58] sm:$0xff] %v652
        %657 = vrot.lane.b32.xlu0 %v418, 113
        %v658 = vpop.permute.xlu0 %657
        %659 = vrot.lane.b32.xlu0 %v420, 113
        %v660 = vpop.permute.xlu0 %659
        %661 = vrot.lane.b32.xlu0 %v419, 113
        %v662 = vpop.permute.xlu0 %661
        %663 = vrot.lane.b32.xlu0 %v421, 113
        %v664 = vpop.permute.xlu0 %663
        %vm665 = vcmp.lt.s32.totalorder %v431, 113
        %v666 = vsel %vm665, %v658, %v662
        %v667 = vsel %vm665, %v660, %v664
        %v668 = vsel %vm665, %v662, %v658
        %v669 = vsel %vm665, %v664, %v660
        %s670 = scalar_lea.vmem %s1, 6
        %v671 = vld [vmem:[%s670] ss:$8 sm:$0x3]
        %v673 = vlaneseq
        %v674 = vshrl.u32 %v673, 7
        %v675 = vsub.s32 0, %v674
        %v676 = vrot.slane %v671, %v675
        %v677 = vlaneseq
        %v678 = vshrl.u32 %v677, 7
        %v679 = vsub.s32 1, %v678
        %v680 = vrot.slane %v671, %v679
        %v683 = vmul.f32 %v666, %v676
        %v684 = vmul.f32 %v668, %v680
        %v685 = vmul.f32 %v667, %v676
        %v686 = vmul.f32 %v669, %v680
        %v687 = vpack.c.bf16 %v685, %v683
        %v688 = vpack.c.bf16 %v686, %v684
        %v691 = vunpack.c.l.b16 %v687
        %v692 = vunpack.c.l.b16 %v688
        %v693 = vunpack.c.h.b16 %v687
        %v694 = vunpack.c.h.b16 %v688
        %v695 = vpack.c.b16 %v692, %v691
        %v696 = vpack.c.b16 %v694, %v693
        %699 = vst [vmem:[#allocation2 + $0x60] sm:$0xff] %v695
        %700 = vst [vmem:[#allocation2 + $0x68] sm:$0xff] %v696
        %701 = vrot.lane.b32.xlu0 %v418, 112
        %v702 = vpop.permute.xlu0 %701
        %703 = vrot.lane.b32.xlu0 %v420, 112
        %v704 = vpop.permute.xlu0 %703
        %705 = vrot.lane.b32.xlu0 %v419, 112
        %v706 = vpop.permute.xlu0 %705
        %707 = vrot.lane.b32.xlu0 %v421, 112
        %v708 = vpop.permute.xlu0 %707
        %vm709 = vcmp.lt.s32.totalorder %v431, 112
        %v710 = vsel %vm709, %v702, %v706
        %v711 = vsel %vm709, %v704, %v708
        %v712 = vsel %vm709, %v706, %v702
        %v713 = vsel %vm709, %v708, %v704
        %s714 = scalar_lea.vmem %s1, 7
        %v715 = vld [vmem:[%s714] ss:$8 sm:$0x3]
        %v717 = vlaneseq
        %v718 = vshrl.u32 %v717, 7
        %v719 = vsub.s32 0, %v718
        %v720 = vrot.slane %v715, %v719
        %v721 = vlaneseq
        %v722 = vshrl.u32 %v721, 7
        %v723 = vsub.s32 1, %v722
        %v724 = vrot.slane %v715, %v723
        %v727 = vmul.f32 %v710, %v720
        %v728 = vmul.f32 %v712, %v724
        %v729 = vmul.f32 %v711, %v720
        %v730 = vmul.f32 %v713, %v724
        %v731 = vpack.c.bf16 %v729, %v727
        %v732 = vpack.c.bf16 %v730, %v728
        %v735 = vunpack.c.l.b16 %v731
        %v736 = vunpack.c.l.b16 %v732
        %v737 = vunpack.c.h.b16 %v731
        %v738 = vunpack.c.h.b16 %v732
        %v739 = vpack.c.b16 %v736, %v735
        %v740 = vpack.c.b16 %v738, %v737
        %743 = vst [vmem:[#allocation2 + $0x70] sm:$0xff] %v739
        %744 = vst [vmem:[#allocation2 + $0x78] sm:$0xff] %v740
        %745 = vrot.lane.b32.xlu0 %v418, 111
        %v746 = vpop.permute.xlu0 %745
        %747 = vrot.lane.b32.xlu0 %v420, 111
        %v748 = vpop.permute.xlu0 %747
        %749 = vrot.lane.b32.xlu0 %v419, 111
        %v750 = vpop.permute.xlu0 %749
        %751 = vrot.lane.b32.xlu0 %v421, 111
        %v752 = vpop.permute.xlu0 %751
        %vm753 = vcmp.lt.s32.totalorder %v431, 111
        %v754 = vsel %vm753, %v746, %v750
        %v755 = vsel %vm753, %v748, %v752
        %v756 = vsel %vm753, %v750, %v746
        %v757 = vsel %vm753, %v752, %v748
        %s758 = scalar_lea.vmem %s1, 16
        %v759 = vld [vmem:[%s758] ss:$8 sm:$0x3]
        %v761 = vlaneseq
        %v762 = vshrl.u32 %v761, 7
        %v763 = vsub.s32 0, %v762
        %v764 = vrot.slane %v759, %v763
        %v765 = vlaneseq
        %v766 = vshrl.u32 %v765, 7
        %v767 = vsub.s32 1, %v766
        %v768 = vrot.slane %v759, %v767
        %v771 = vmul.f32 %v754, %v764
        %v772 = vmul.f32 %v756, %v768
        %v773 = vmul.f32 %v755, %v764
        %v774 = vmul.f32 %v757, %v768
        %v775 = vpack.c.bf16 %v773, %v771
        %v776 = vpack.c.bf16 %v774, %v772
        %v779 = vunpack.c.l.b16 %v775
        %v780 = vunpack.c.l.b16 %v776
        %v781 = vunpack.c.h.b16 %v775
        %v782 = vunpack.c.h.b16 %v776
        %v783 = vpack.c.b16 %v780, %v779
        %v784 = vpack.c.b16 %v782, %v781
        %787 = vst [vmem:[#allocation2 + $0x80] sm:$0xff] %v783
        %788 = vst [vmem:[#allocation2 + $0x88] sm:$0xff] %v784
        %v789 = vld [vmem:[%s4] sm:$0xff]
        %v790 = vld [vmem:[%s4 + $0x8] sm:$0xff]
        %v791 = vld [vmem:[#allocation2] sm:$0xff]
        %v792 = vld [vmem:[#allocation2 + $0x8] sm:$0xff]
        %v793 = vld [vmem:[#allocation2 + $0x10] sm:$0xff]
        %v794 = vld [vmem:[#allocation2 + $0x18] sm:$0xff]
        %v795 = vld [vmem:[#allocation2 + $0x20] sm:$0xff]
        %v796 = vld [vmem:[#allocation2 + $0x28] sm:$0xff]
        %v797 = vld [vmem:[#allocation2 + $0x30] sm:$0xff]
        %v798 = vld [vmem:[#allocation2 + $0x38] sm:$0xff]
        %v799 = vld [vmem:[#allocation2 + $0x40] sm:$0xff]
        %v800 = vld [vmem:[#allocation2 + $0x48] sm:$0xff]
        %v801 = vld [vmem:[#allocation2 + $0x50] sm:$0xff]
        %v802 = vld [vmem:[#allocation2 + $0x58] sm:$0xff]
        %v803 = vld [vmem:[#allocation2 + $0x60] sm:$0xff]
        %v804 = vld [vmem:[#allocation2 + $0x68] sm:$0xff]
        %v805 = vld [vmem:[#allocation2 + $0x70] sm:$0xff]
        %v806 = vld [vmem:[#allocation2 + $0x78] sm:$0xff]
        %v807 = vld [vmem:[#allocation2 + $0x80] sm:$0xff]
        %v808 = vld [vmem:[#allocation2 + $0x88] sm:$0xff]
        %v809 = vld [vmem:[%s5] sm:$0xff]
        %v810 = vld [vmem:[%s5 + $0x8] sm:$0xff]
        %812 = vset.pattern.permute.xlu0 0
        %813 = vperm.xlu0 %812, %v809
        %v814 = vpop.permute.xlu0 %813
        %817 = vset.pattern.permute.xlu0 0
        %818 = vperm.xlu0 %817, %v810
        %v819 = vpop.permute.xlu0 %818
        %v823 = vunpack.c.l.b16 %v789
        %v824 = vunpack.c.h.b16 %v789
        %v825 = vunpack.c.l.b16 %v790
        %v826 = vunpack.c.h.b16 %v790
        %v827 = vpack.c.b16 %v825, %v823
        %v828 = vpack.c.b16 %v826, %v824
        %v848 = vunpack.c.l.b16 %v791
        %v849 = vunpack.c.h.b16 %v791
        %v850 = vunpack.c.l.b16 %v792
        %v851 = vunpack.c.h.b16 %v792
        %v852 = vunpack.c.l.b16 %v793
        %v853 = vunpack.c.h.b16 %v793
        %v854 = vunpack.c.l.b16 %v794
        %v855 = vunpack.c.h.b16 %v794
        %v856 = vunpack.c.l.b16 %v795
        %v857 = vunpack.c.h.b16 %v795
        %v858 = vunpack.c.l.b16 %v796
        %v859 = vunpack.c.h.b16 %v796
        %v860 = vunpack.c.l.b16 %v797
        %v861 = vunpack.c.h.b16 %v797
        %v862 = vunpack.c.l.b16 %v798
        %v863 = vunpack.c.h.b16 %v798
        %v864 = vunpack.c.l.b16 %v799
        %v865 = vunpack.c.h.b16 %v799
        %v866 = vunpack.c.l.b16 %v800
        %v867 = vunpack.c.h.b16 %v800
        %v868 = vunpack.c.l.b16 %v801
        %v869 = vunpack.c.h.b16 %v801
        %v870 = vunpack.c.l.b16 %v802
        %v871 = vunpack.c.h.b16 %v802
        %v872 = vunpack.c.l.b16 %v803
        %v873 = vunpack.c.h.b16 %v803
        %v874 = vunpack.c.l.b16 %v804
        %v875 = vunpack.c.h.b16 %v804
        %v876 = vunpack.c.l.b16 %v805
        %v877 = vunpack.c.h.b16 %v805
        %v878 = vunpack.c.l.b16 %v806
        %v879 = vunpack.c.h.b16 %v806
        %v880 = vunpack.c.l.b16 %v807
        %v881 = vunpack.c.h.b16 %v807
        %v882 = vunpack.c.l.b16 %v808
        %v883 = vunpack.c.h.b16 %v808
        %v884 = vpack.c.b16 %v850, %v848
        %v885 = vpack.c.b16 %v851, %v849
        %v886 = vpack.c.b16 %v854, %v852
        %v887 = vpack.c.b16 %v855, %v853
        %v888 = vpack.c.b16 %v858, %v856
        %v889 = vpack.c.b16 %v859, %v857
        %v890 = vpack.c.b16 %v862, %v860
        %v891 = vpack.c.b16 %v863, %v861
        %v892 = vpack.c.b16 %v866, %v864
        %v893 = vpack.c.b16 %v867, %v865
        %v894 = vpack.c.b16 %v870, %v868
        %v895 = vpack.c.b16 %v871, %v869
        %v896 = vpack.c.b16 %v874, %v872
        %v897 = vpack.c.b16 %v875, %v873
        %v898 = vpack.c.b16 %v878, %v876
        %v899 = vpack.c.b16 %v879, %v877
        %v900 = vpack.c.b16 %v882, %v880
        %v901 = vpack.c.b16 %v883, %v881
        %v921 = vsel %vm367, %v828, 0
        %923 = vmatprep.subr.bf16.mxu0 %v899
        %924 = vmatpush1.bf16.msra.mxu0 %v898
        %925 = vmatprep.subr.bf16.mxu0 %v897
        %926 = vmatpush1.bf16.msra.mxu0 %v896
        %927 = vmatprep.subr.bf16.mxu0 %v895
        %928 = vmatpush1.bf16.msra.mxu0 %v894
        %929 = vmatprep.subr.bf16.mxu0 %v893
        %930 = vmatpush1.bf16.msra.mxu0 %v892
        %931 = vmatprep.subr.bf16.mxu0 %v891
        %932 = vmatpush1.bf16.msra.mxu0 %v890
        %933 = vmatprep.subr.bf16.mxu0 %v889
        %934 = vmatpush1.bf16.msra.mxu0 %v888
        %935 = vmatprep.subr.bf16.mxu0 %v887
        %936 = vmatpush1.bf16.msra.mxu0 %v886
        %937 = vmatprep.subr.bf16.mxu0 %v885
        %938 = vmatpush1.bf16.msra.mxu0 %v884
        %939 = vmatprep.subr.bf16.mxu0 0
        %940 = vmatpush2.bf16.msra.mxu0 0
        %941 = vmatprep.subr.bf16.mxu0 0
        %942 = vmatpush2.bf16.msra.mxu0 0
        %943 = vmatprep.subr.bf16.mxu0 0
        %944 = vmatpush2.bf16.msra.mxu0 0
        %945 = vmatprep.subr.bf16.mxu0 0
        %946 = vmatpush2.bf16.msra.mxu0 0
        %947 = vmatprep.subr.bf16.mxu0 0
        %948 = vmatpush2.bf16.msra.mxu0 0
        %949 = vmatprep.subr.bf16.mxu0 0
        %950 = vmatpush2.bf16.msra.mxu0 0
        %951 = vmatprep.subr.bf16.mxu0 0
        %952 = vmatpush2.bf16.msra.mxu0 0
        %953 = vmatprep.subr.bf16.mxu0 %v901
        %954 = vmatpush2.bf16.msra.mxu0 %v900
        %955 = vmatprep.mubr.bf16.mxu0 %v921
        %956 = vmatmul.mubr.bf16.gmra.mxu0 %v827
        %v957 = vpop.f32.mrf.mxu0
        %v958 = vadd.f32 %v814, %v957
        %v959 = vpop.f32.mrf.mxu0
        %v960 = vadd.f32 %v814, %v959
        %v961 = vpop.f32.mrf.mxu0
        %v962 = vadd.f32 %v819, %v961
        %v963 = vpop.f32.mrf.mxu0
        %v964 = vadd.f32 %v819, %v963
        %965 = vdwg.mxu0
        %v966 = vmul.f32 %v958, 0.1
        %v967 = vmul.f32 %v960, 0.1
        %v968 = vmul.f32 %v962, 0.1
        %v969 = vmul.f32 %v964, 0.1
        %v970 = vmax.f32 %v958, %v966
        %v971 = vmax.f32 %v960, %v967
        %v972 = vmax.f32 %v962, %v968
        %v973 = vmax.f32 %v964, %v969
        %v974 = vld [vmem:[%s6] sm:$0xf]
        %v975 = vld [vmem:[%s6 + $0x4] sm:$0xf]
        %v976 = vpack.c.bf16 %v972, %v970
        %v977 = vpack.c.bf16 %v973, %v971
        %v978 = vld [vmem:[%s7] sm:$0xff]
        %v979 = vld [vmem:[%s7 + $0x8] sm:$0xff]
        %981 = vset.pattern.permute.xlu0 0
        %982 = vperm.xlu0 %981, %v978
        %v983 = vpop.permute.xlu0 %982
        %986 = vset.pattern.permute.xlu0 0
        %987 = vperm.xlu0 %986, %v979
        %v988 = vpop.permute.xlu0 %987
        %v992 = vunpack.c.l.b16 %v974
        %v993 = vunpack.c.l.b16 %v975
        %v994 = vpack.c.b16 %v993, %v992
        %v996 = vsel %vm367, %v994, 0
        %998 = vmatprep.subr.bf16.mxu0 0
        %999 = vmatpush1.bf16.msra.mxu0 0
        %1000 = vmatprep.subr.bf16.mxu0 0
        %1001 = vmatpush1.bf16.msra.mxu0 0
        %1002 = vmatprep.subr.bf16.mxu0 0
        %1003 = vmatpush1.bf16.msra.mxu0 0
        %1004 = vmatprep.subr.bf16.mxu0 0
        %1005 = vmatpush1.bf16.msra.mxu0 0
        %1006 = vmatprep.subr.bf16.mxu0 0
        %1007 = vmatpush1.bf16.msra.mxu0 0
        %1008 = vmatprep.subr.bf16.mxu0 0
        %1009 = vmatpush1.bf16.msra.mxu0 0
        %1010 = vmatprep.subr.bf16.mxu0 0
        %1011 = vmatpush1.bf16.msra.mxu0 0
        %1012 = vmatprep.subr.bf16.mxu0 %v977
        %1013 = vmatpush1.bf16.msra.mxu0 %v976
        %1014 = vmatprep.subr.bf16.mxu0 0
        %1015 = vmatpush2.bf16.msra.mxu0 0
        %1016 = vmatprep.subr.bf16.mxu0 0
        %1017 = vmatpush2.bf16.msra.mxu0 0
        %1018 = vmatprep.subr.bf16.mxu0 0
        %1019 = vmatpush2.bf16.msra.mxu0 0
        %1020 = vmatprep.subr.bf16.mxu0 0
        %1021 = vmatpush2.bf16.msra.mxu0 0
        %1022 = vmatprep.subr.bf16.mxu0 0
        %1023 = vmatpush2.bf16.msra.mxu0 0
        %1024 = vmatprep.subr.bf16.mxu0 0
        %1025 = vmatpush2.bf16.msra.mxu0 0
        %1026 = vmatprep.subr.bf16.mxu0 0
        %1027 = vmatpush2.bf16.msra.mxu0 0
        %1028 = vmatprep.subr.bf16.mxu0 0
        %1029 = vmatpush2.bf16.msra.mxu0 0
        %1030 = vmatprep.mubr.bf16.mxu0 0
        %1031 = vmatmul.mubr.bf16.gmra.mxu0 %v996
        %v1032 = vpop.f32.mrf.mxu0
        %v1033 = vadd.f32 %v983, %v1032
        %v1034 = vpop.f32.mrf.mxu0
        %v1035 = vadd.f32 %v983, %v1034
        %v1036 = vpop.f32.mrf.mxu0
        %v1037 = vadd.f32 %v988, %v1036
        %v1038 = vpop.f32.mrf.mxu0
        %v1039 = vadd.f32 %v988, %v1038
        %1040 = vdwg.mxu0
        %v1041 = vadd.f32 %v1033, %v342
        %v1042 = vadd.f32 %v1035, %v343
        %v1043 = vadd.f32 %v1037, %v344
        %v1044 = vadd.f32 %v1039, %v345
        %v1045 = vmul.f32 %v1041, 0.1
        %v1046 = vmul.f32 %v1042, 0.1
        %v1047 = vmul.f32 %v1043, 0.1
        %v1048 = vmul.f32 %v1044, 0.1
        %v1049 = vmax.f32 %v1041, %v1045
        %v1050 = vmax.f32 %v1042, %v1046
        %v1051 = vmax.f32 %v1043, %v1047
        %v1052 = vmax.f32 %v1044, %v1048
        %1053 = vst [vmem:[%s338] sm:$0xff] %v1049
        %1054 = vst [vmem:[%s338 + $0x8] sm:$0xff] %v1050
        %1055 = vst [vmem:[%s338 + $0x10] sm:$0xff] %v1051
        %1056 = vst [vmem:[%s338 + $0x18] sm:$0xff] %v1052
        %s1057 = sand.u32 %s207, 1
        %s1058 = scalar_lea.sflag [#allocation5], %s1057
        %s1059 = sand.u32 %s207, 1
        %s1060 = smul.addr %s1059, 32
        %s1061 = scalar_lea.vmem [#allocation8], %s1060
        // Predicated region
        $region61: #{tpu_custom_call.1} parent=51 // pred_check
          %p1062 = pneg %p217
        $region62: #{tpu_custom_call.1} parent=51 // pred_check_branch
          %1064 = sbr.rel (%p1062) target = $region64
        $region63: #{tpu_custom_call.1} parent=51 // pred_region
          %s1065 = smul.u32 2, %s26
          %s1067 = ssub.s32 512, 512
          %1068 = vsyncadd %s1058, %s1067
          %s1069 = smul.addr %s1065, 128
          %s1070 = scalar_lea.hbm %s8, %s1069
          %s1071 = sshll.u32 %s1061, 4
          %s1072 = int_to_ptr.vmem [resolvable:$true] %s1071
          %1077 = dma.vmem_to_hbm [thread:$0]  %s1072, 512, %s1070, %s1058, 256, 512, 16
        $region64: #{tpu_custom_call.1} parent=51 // pred_fallthru
          _
      $region52: #{tpu_custom_call.1} parent=5 // pred_fallthru
        _
      %p1078 = scmp.le.s32.totalorder 2, %s21
      // Predicated region
      $region65: #{tpu_custom_call.1} parent=5 // pred_check
        %p1079 = pneg %p1078
      $region66: #{tpu_custom_call.1} parent=5 // pred_check_branch
        %1081 = sbr.rel (%p1079) target = $region68
      $region67: #{tpu_custom_call.1} parent=5 // pred_region
        %s1082 = ssub.s32 %s21, 2
        // Predicated region
        $region69: #{tpu_custom_call.1} parent=67 // pred_check
          %p1083 = pneg %p223
        $region70: #{tpu_custom_call.1} parent=67 // pred_check_branch
          %1085 = sbr.rel (%p1083) target = $region72
        $region71: #{tpu_custom_call.1} parent=67 // pred_region
          %s1086 = sand.u32 %s208, 1
          %s1087 = scalar_lea.sflag [#allocation5], %s1086
          %s1088 = sand.u32 %s208, 1
          %s1089 = smul.addr %s1088, 32
          %s1090 = scalar_lea.vmem [#allocation8], %s1089
          %1091 = dma.done %s1087, 512
        $region72: #{tpu_custom_call.1} parent=67 // pred_fallthru
          _
      $region68: #{tpu_custom_call.1} parent=5 // pred_fallthru
        _
    $region6: #{tpu_custom_call.1} parent=1 // loop_footer
      %s25 = sadd.s32 1, %s21
    $region7: #{tpu_custom_call.1} parent=1 // loop_footer_branch
      %20 = sbr.rel target = $region3
    $region8: #{tpu_custom_call.1} parent=1 // loop_exit
      _
    %1092 = vsyncpa [#allocation4], 1
    %s1093 = scalar_lea.sflag [#allocation4], 1
    %1094 = vsyncpa %s1093, 1
    %1095 = vsyncpa [#allocation7], 1
    %1096 = vsyncpa [#allocation5], 1
    %s1097 = scalar_lea.sflag [#allocation5], 1
    %1098 = vsyncpa %s1097, 1

</llo_original>
